<compile_context>
chip_gen: v6e
topology: v6e:2x2x1
jax: 0.10.0
libtpu: 0.0.40
codegen_flags: <defaults>
</compile_context>

<pallas_src>
import functools

import jax
import jax.numpy as jnp
from jax.experimental import pallas as pl
from jax.experimental.pallas import tpu as pltpu

_LANE = 128
_SUBLANE = 8


def _round_up(n, m):
    return ((n + m - 1) // m) * m


def _discriminator_kernel(*refs, training: bool):
    if training:
        (x_ref, m1_ref, m2_ref,
         w1_ref, b1_ref, w2_ref, b2_ref, w3_ref, b3_ref, o_ref) = refs
    else:
        (x_ref, w1_ref, b1_ref, w2_ref, b2_ref, w3_ref, b3_ref, o_ref) = refs
        m1_ref = m2_ref = None

    cd = w1_ref.dtype  # compute dtype for the MXU (bf16)

    # ad_layer1 + ReLU (+ dropout1). bf16 MXU inputs, f32 accumulation.
    h = jnp.dot(x_ref[...], w1_ref[...], preferred_element_type=jnp.float32)
    h = jnp.maximum(h + b1_ref[...], 0.0)
    if training:
        h = h * m1_ref[...].astype(jnp.float32)  # mask holds {0.0, 2.0}
    h = h.astype(cd)

    # ad_layer2 + ReLU (+ dropout2).
    h = jnp.dot(h, w2_ref[...], preferred_element_type=jnp.float32)
    h = jnp.maximum(h + b2_ref[...], 0.0)
    if training:
        h = h * m2_ref[...].astype(jnp.float32)
    h = h.astype(cd)

    # ad_layer3 (dropout3 exists in __init__ but is never used in forward).
    y = jnp.dot(h, w3_ref[...], preferred_element_type=jnp.float32) + b3_ref[...]
    o_ref[...] = y.astype(o_ref.dtype)


@functools.partial(jax.jit, static_argnames=("training", "block_b", "compute_dtype"))
def discriminator_forward(x, params, *, training: bool = False, rng_key=None,
                          block_b: int = 256, compute_dtype=jnp.bfloat16):
    """x: (B, in_feature) float32. Returns (B, out_feature) float32 logits."""
    w1, b1, w2, b2, w3, b3 = params  # weights stored as (in, out); biases (1, out)
    B, in_feature = x.shape
    hidden = w1.shape[1]
    out_feature = w3.shape[1]
    cd = compute_dtype

    # ---- Lane-align hidden / output dims, sublane-align the batch tile. ----
    Hp = _round_up(hidden, _LANE)
    Op = _round_up(out_feature, _LANE)
    TB = min(block_b, _round_up(B, _SUBLANE))
    Bp = _round_up(B, TB)
    nb = Bp // TB

    # Zero-padding is numerically inert: padded K rows are zero, padded N cols
    # give zero activations, ReLU(0)=0, dropout(0)=0; padded logit cols sliced off.
    xp = jnp.zeros((Bp, in_feature), cd).at[:B].set(x.astype(cd))
    w1p = jnp.zeros((in_feature, Hp), cd).at[:, :hidden].set(w1.astype(cd))
    b1p = jnp.zeros((1, Hp), jnp.float32).at[:, :hidden].set(b1.astype(jnp.float32))
    w2p = jnp.zeros((Hp, Hp), cd).at[:hidden, :hidden].set(w2.astype(cd))
    b2p = jnp.zeros((1, Hp), jnp.float32).at[:, :hidden].set(b2.astype(jnp.float32))
    w3p = jnp.zeros((Hp, Op), cd).at[:hidden, :out_feature].set(w3.astype(cd))
    b3p = jnp.zeros((1, Op), jnp.float32).at[:, :out_feature].set(b3.astype(jnp.float32))

    inputs = [xp]
    in_specs = [pl.BlockSpec((TB, in_feature), lambda i: (i, 0))]

    if training:
        if rng_key is None:
            rng_key = jax.random.PRNGKey(0)
        k1, k2 = jax.random.split(rng_key)
        two = jnp.asarray(2.0, cd)  # 1/(1-p) for p = 0.5
        m1 = jax.random.bernoulli(k1, 0.5, (Bp, Hp)).astype(cd) * two
        m2 = jax.random.bernoulli(k2, 0.5, (Bp, Hp)).astype(cd) * two
        mask_spec = pl.BlockSpec((TB, Hp), lambda i: (i, 0))
        inputs += [m1, m2]
        in_specs += [mask_spec, mask_spec]

    def _const(shape):
        # Weights/biases: same block every grid step -> stay resident in VMEM.
        return pl.BlockSpec(shape, lambda i: (0, 0))

    inputs += [w1p, b1p, w2p, b2p, w3p, b3p]
    in_specs += [_const(w1p.shape), _const(b1p.shape), _const(w2p.shape),
                 _const(b2p.shape), _const(w3p.shape), _const(b3p.shape)]

    out_spec = pl.BlockSpec((TB, Op), lambda i: (i, 0))

    # ---- Explicit VMEM budget (only raise the scoped limit when needed). ----
    isz = jnp.dtype(cd).itemsize
    block_bytes = TB * in_feature * isz
    if training:
        block_bytes += 2 * TB * Hp * isz
    block_bytes += (w1p.size + w2p.size + w3p.size) * isz
    block_bytes += (b1p.size + b2p.size + b3p.size) * 4
    block_bytes += TB * Op * 4
    vmem_est = 2 * block_bytes  # double-buffered pipeline
    compiler_kwargs = dict(dimension_semantics=("parallel",))
    if vmem_est > 32 * 1024 * 1024:
        compiler_kwargs["vmem_limit_bytes"] = min(int(vmem_est * 5 // 4),
                                                  128 * 1024 * 1024)

    kernel = functools.partial(_discriminator_kernel, training=training)

    y = pl.pallas_call(
        kernel,
        out_shape=jax.ShapeDtypeStruct((Bp, Op), jnp.float32),
        grid_spec=pl.GridSpec(grid=(nb,), in_specs=in_specs, out_specs=out_spec),
        compiler_params=pltpu.CompilerParams(**compiler_kwargs),
    )(*inputs)

    return y[:B, :out_feature]


def init_params(key, in_feature, hidden_size, out_feature=1):
    """Mimics _init_params: kaiming_normal_ (fan_in, gain=sqrt(2)) on weights,
    zero biases. Weights stored as (in, out) = transpose of PyTorch layout."""
    k1, k2, k3 = jax.random.split(key, 3)

    def kaiming_normal(k, fan_in, fan_out):
        std = (2.0 / fan_in) ** 0.5
        # PyTorch weight is (out, in); we store its transpose (in, out).
        return (std * jax.random.normal(k, (fan_out, fan_in), jnp.float32)).T

    w1 = kaiming_normal(k1, in_feature, hidden_size)
    b1 = jnp.zeros((1, hidden_size), jnp.float32)
    w2 = kaiming_normal(k2, hidden_size, hidden_size)
    b2 = jnp.zeros((1, hidden_size), jnp.float32)
    w3 = kaiming_normal(k3, hidden_size, out_feature)
    b3 = jnp.zeros((1, out_feature), jnp.float32)
    return (w1, b1, w2, b2, w3, b3)


def reference_forward(x, params, compute_dtype=jnp.bfloat16):
    """Pure-JAX reference, eval mode (dropout = identity), same bf16-MXU /
    f32-accumulate numerics as the kernel."""
    w1, b1, w2, b2, w3, b3 = params
    cd = compute_dtype
    h = jnp.dot(x.astype(cd), w1.astype(cd), preferred_element_type=jnp.float32) + b1
    h = jnp.maximum(h, 0.0)
    h = jnp.dot(h.astype(cd), w2.astype(cd), preferred_element_type=jnp.float32) + b2
    h = jnp.maximum(h, 0.0)
    return jnp.dot(h.astype(cd), w3.astype(cd), preferred_element_type=jnp.float32) + b3


if __name__ == "__main__":
    key = jax.random.PRNGKey(0)
    kx, kp, kd = jax.random.split(key, 3)

    batch, in_feature, hidden_size, out_feature = 8, 64, 32, 1
    x = jax.random.normal(kx, (batch, in_feature), jnp.float32)
    params = init_params(kp, in_feature, hidden_size, out_feature)

    # coeff only scales the reversed gradient in the backward hook; it does not
    # change the forward output, so it is not an input to the kernel.

    # Eval mode: deterministic, dropout = identity; check against reference.
    y = jax.block_until_ready(discriminator_forward(x, params, training=False))
    y_ref = reference_forward(x, params)
    assert y.shape == (batch, out_feature)
    assert jnp.allclose(y, y_ref, atol=1e-2, rtol=1e-2), "mismatch vs reference"

    # Training mode: exercise the dropout path once (stochastic masks).
    y_tr = jax.block_until_ready(
        discriminator_forward(x, params, training=True, rng_key=kd))
    assert y_tr.shape == (batch, out_feature)
    assert bool(jnp.all(jnp.isfinite(y_tr)))

    print("KERNEL_OK")
</pallas_src>

<mosaic_0001>
module attributes {stable_mosaic.version = 11 : i64} {
  func.func @_discriminator_kernel(%arg0: i32, %arg1: memref<8x64xbf16, #tpu.memory_space<vmem>>, %arg2: memref<64x128xbf16, #tpu.memory_space<vmem>>, %arg3: memref<1x128xf32, #tpu.memory_space<vmem>>, %arg4: memref<128x128xbf16, #tpu.memory_space<vmem>>, %arg5: memref<1x128xf32, #tpu.memory_space<vmem>>, %arg6: memref<128x128xbf16, #tpu.memory_space<vmem>>, %arg7: memref<1x128xf32, #tpu.memory_space<vmem>>, %arg8: memref<8x128xf32, #tpu.memory_space<vmem>>) attributes {dimension_semantics = [#tpu.dimension_semantics<parallel>], iteration_bounds = array<i64: 1>, scalar_prefetch = 0 : i64, scratch_operands = 0 : i64, tpu.core_type = #tpu.core_type<tc>, window_params = [{transform_indices = @transform_0, window_bounds = array<i64: 8, 64>}, {pipeline_mode = #tpu.pipeline_mode<synchronous>, transform_indices = @transform_1, window_bounds = array<i64: 64, 128>}, {pipeline_mode = #tpu.pipeline_mode<synchronous>, transform_indices = @transform_2, window_bounds = array<i64: 1, 128>}, {pipeline_mode = #tpu.pipeline_mode<synchronous>, transform_indices = @transform_3, window_bounds = array<i64: 128, 128>}, {pipeline_mode = #tpu.pipeline_mode<synchronous>, transform_indices = @transform_4, window_bounds = array<i64: 1, 128>}, {pipeline_mode = #tpu.pipeline_mode<synchronous>, transform_indices = @transform_5, window_bounds = array<i64: 128, 128>}, {pipeline_mode = #tpu.pipeline_mode<synchronous>, transform_indices = @transform_6, window_bounds = array<i64: 1, 128>}, {transform_indices = @transform_7, window_bounds = array<i64: 8, 128>}]} {
    %c0 = arith.constant 0 : index
    %c0_0 = arith.constant 0 : index
    %0 = vector.load %arg1[%c0, %c0_0] : memref<8x64xbf16, #tpu.memory_space<vmem>>, vector<8x64xbf16>
    %c0_1 = arith.constant 0 : index
    %c0_2 = arith.constant 0 : index
    %1 = vector.load %arg2[%c0_1, %c0_2] : memref<64x128xbf16, #tpu.memory_space<vmem>>, vector<64x128xbf16>
    %cst = arith.constant dense<0.000000e+00> : vector<8x128xf32>
    %2 = tpu.matmul %0, %1, %cst {dimension_numbers = #tpu.dot_dimension_numbers<[1], [0], [0], [1], [0, 0, 1, 1], [], []>} : vector<8x64xbf16>, vector<64x128xbf16>, vector<8x128xf32> -> vector<8x128xf32>
    %c0_3 = arith.constant 0 : index
    %c0_4 = arith.constant 0 : index
    %3 = vector.load %arg3[%c0_3, %c0_4] : memref<1x128xf32, #tpu.memory_space<vmem>>, vector<1x128xf32>
    %4 = vector.broadcast %3 : vector<1x128xf32> to vector<8x128xf32>
    %5 = arith.addf %2, %4 : vector<8x128xf32>
    %cst_5 = arith.constant 0.000000e+00 : f32
    %6 = vector.broadcast %cst_5 : f32 to vector<8x128xf32>
    %7 = arith.maximumf %5, %6 : vector<8x128xf32>
    %8 = arith.truncf %7 : vector<8x128xf32> to vector<8x128xbf16>
    %c0_6 = arith.constant 0 : index
    %c0_7 = arith.constant 0 : index
    %9 = vector.load %arg4[%c0_6, %c0_7] : memref<128x128xbf16, #tpu.memory_space<vmem>>, vector<128x128xbf16>
    %cst_8 = arith.constant dense<0.000000e+00> : vector<8x128xf32>
    %10 = tpu.matmul %8, %9, %cst_8 {dimension_numbers = #tpu.dot_dimension_numbers<[1], [0], [0], [1], [0, 0, 1, 1], [], []>} : vector<8x128xbf16>, vector<128x128xbf16>, vector<8x128xf32> -> vector<8x128xf32>
    %c0_9 = arith.constant 0 : index
    %c0_10 = arith.constant 0 : index
    %11 = vector.load %arg5[%c0_9, %c0_10] : memref<1x128xf32, #tpu.memory_space<vmem>>, vector<1x128xf32>
    %12 = vector.broadcast %11 : vector<1x128xf32> to vector<8x128xf32>
    %13 = arith.addf %10, %12 : vector<8x128xf32>
    %cst_11 = arith.constant 0.000000e+00 : f32
    %14 = vector.broadcast %cst_11 : f32 to vector<8x128xf32>
    %15 = arith.maximumf %13, %14 : vector<8x128xf32>
    %16 = arith.truncf %15 : vector<8x128xf32> to vector<8x128xbf16>
    %c0_12 = arith.constant 0 : index
    %c0_13 = arith.constant 0 : index
    %17 = vector.load %arg6[%c0_12, %c0_13] : memref<128x128xbf16, #tpu.memory_space<vmem>>, vector<128x128xbf16>
    %cst_14 = arith.constant dense<0.000000e+00> : vector<8x128xf32>
    %18 = tpu.matmul %16, %17, %cst_14 {dimension_numbers = #tpu.dot_dimension_numbers<[1], [0], [0], [1], [0, 0, 1, 1], [], []>} : vector<8x128xbf16>, vector<128x128xbf16>, vector<8x128xf32> -> vector<8x128xf32>
    %c0_15 = arith.constant 0 : index
    %c0_16 = arith.constant 0 : index
    %19 = vector.load %arg7[%c0_15, %c0_16] : memref<1x128xf32, #tpu.memory_space<vmem>>, vector<1x128xf32>
    %20 = vector.broadcast %19 : vector<1x128xf32> to vector<8x128xf32>
    %21 = arith.addf %18, %20 : vector<8x128xf32>
    %c0_17 = arith.constant 0 : index
    %c0_18 = arith.constant 0 : index
    %22 = vector.load %arg8[%c0_17, %c0_18] : memref<8x128xf32, #tpu.memory_space<vmem>>, vector<8x128xf32>
    tpu.vector_store %arg8[%c0_17, %c0_18], %21 {strides = array<i32>} : memref<8x128xf32, #tpu.memory_space<vmem>>, vector<8x128xf32>,
    return
  }
  func.func @transform_0(%arg0: i32) -> (i32, i32) {
    %c0_i32 = arith.constant 0 : i32
    %c0_i32_0 = arith.constant 0 : i32
    return %arg0, %c0_i32 : i32, i32
  }
  func.func @transform_1(%arg0: i32) -> (i32, i32) {
    %c0_i32 = arith.constant 0 : i32
    %c0_i32_0 = arith.constant 0 : i32
    %c0_i32_1 = arith.constant 0 : i32
    return %c0_i32, %c0_i32_0 : i32, i32
  }
  func.func @transform_2(%arg0: i32) -> (i32, i32) {
    %c0_i32 = arith.constant 0 : i32
    %c0_i32_0 = arith.constant 0 : i32
    %c0_i32_1 = arith.constant 0 : i32
    return %c0_i32, %c0_i32_0 : i32, i32
  }
  func.func @transform_3(%arg0: i32) -> (i32, i32) {
    %c0_i32 = arith.constant 0 : i32
    %c0_i32_0 = arith.constant 0 : i32
    %c0_i32_1 = arith.constant 0 : i32
    return %c0_i32, %c0_i32_0 : i32, i32
  }
  func.func @transform_4(%arg0: i32) -> (i32, i32) {
    %c0_i32 = arith.constant 0 : i32
    %c0_i32_0 = arith.constant 0 : i32
    %c0_i32_1 = arith.constant 0 : i32
    return %c0_i32, %c0_i32_0 : i32, i32
  }
  func.func @transform_5(%arg0: i32) -> (i32, i32) {
    %c0_i32 = arith.constant 0 : i32
    %c0_i32_0 = arith.constant 0 : i32
    %c0_i32_1 = arith.constant 0 : i32
    return %c0_i32, %c0_i32_0 : i32, i32
  }
  func.func @transform_6(%arg0: i32) -> (i32, i32) {
    %c0_i32 = arith.constant 0 : i32
    %c0_i32_0 = arith.constant 0 : i32
    %c0_i32_1 = arith.constant 0 : i32
    return %c0_i32, %c0_i32_0 : i32, i32
  }
  func.func @transform_7(%arg0: i32) -> (i32, i32) {
    %c0_i32 = arith.constant 0 : i32
    %c0_i32_0 = arith.constant 0 : i32
    return %arg0, %c0_i32 : i32, i32
  }
}

</mosaic_0001>

<llo_original>
// kernel: discriminator_forward.1
$region0: #{discriminator_forward.1}
  #allocation0 [shape = 'u32[]', space=smem, size = 0x4, offset = 0x4, fixed_abs, tag = 'smem constant byte address 0x4 - core index']
  #allocation1 [shape = 'u32[144,128]{1,0:T(1,128)}', space=vmem, size = 0x12000, scoped, tag = 'internal scratch']
  %s0 = inlined_call_operand.vmem [shape: bf16[8,64], index: 0, kind: input, shape index: {}]
  %s1 = inlined_call_operand.vmem [shape: bf16[64,128], index: 1, kind: input, shape index: {}]
  %s2 = inlined_call_operand.vmem [shape: f32[1,128], index: 2, kind: input, shape index: {}]
  %s3 = inlined_call_operand.vmem [shape: bf16[128,128], index: 3, kind: input, shape index: {}]
  %s4 = inlined_call_operand.vmem [shape: f32[1,128], index: 4, kind: input, shape index: {}]
  %s5 = inlined_call_operand.vmem [shape: bf16[128,128], index: 5, kind: input, shape index: {}]
  %s6 = inlined_call_operand.vmem [shape: f32[1,128], index: 6, kind: input, shape index: {}]
  %s7 = inlined_call_operand.vmem [shape: f32[8,128], index: 7, kind: output, shape index: {}]
  %s8 = sld [smem:[#allocation0]]
  $region38: #{discriminator_forward.1} parent=0
    _
  %s10 = ssub.s32 1, %s8
  %s11 = scalar_select 0, %s10, %s8
  // Predicated region
  $region2: #{discriminator_forward.1} parent=0 // pred_check
    _
  $region3: #{discriminator_forward.1} parent=0 // pred_check_branch
    %13 = sbr.rel (0) target = $region5
  $region4: #{discriminator_forward.1} parent=0 // pred_region
    _
  $region5: #{discriminator_forward.1} parent=0 // pred_fallthru
    _
  // Predicated region
  $region6: #{discriminator_forward.1} parent=0 // pred_check
    _
  $region7: #{discriminator_forward.1} parent=0 // pred_check_branch
    %15 = sbr.rel (0) target = $region9
  $region8: #{discriminator_forward.1} parent=0 // pred_region
    _
  $region9: #{discriminator_forward.1} parent=0 // pred_fallthru
    _
  // Predicated region
  $region10: #{discriminator_forward.1} parent=0 // pred_check
    _
  $region11: #{discriminator_forward.1} parent=0 // pred_check_branch
    %17 = sbr.rel (0) target = $region13
  $region12: #{discriminator_forward.1} parent=0 // pred_region
    _
  $region13: #{discriminator_forward.1} parent=0 // pred_fallthru
    _
  // Predicated region
  $region14: #{discriminator_forward.1} parent=0 // pred_check
    _
  $region15: #{discriminator_forward.1} parent=0 // pred_check_branch
    %19 = sbr.rel (0) target = $region17
  $region16: #{discriminator_forward.1} parent=0 // pred_region
    _
  $region17: #{discriminator_forward.1} parent=0 // pred_fallthru
    _
  // Predicated region
  $region18: #{discriminator_forward.1} parent=0 // pred_check
    _
  $region19: #{discriminator_forward.1} parent=0 // pred_check_branch
    %21 = sbr.rel (0) target = $region21
  $region20: #{discriminator_forward.1} parent=0 // pred_region
    _
  $region21: #{discriminator_forward.1} parent=0 // pred_fallthru
    _
  // Predicated region
  $region22: #{discriminator_forward.1} parent=0 // pred_check
    _
  $region23: #{discriminator_forward.1} parent=0 // pred_check_branch
    %23 = sbr.rel (0) target = $region25
  $region24: #{discriminator_forward.1} parent=0 // pred_region
    _
  $region25: #{discriminator_forward.1} parent=0 // pred_fallthru
    _
  // Predicated region
  $region26: #{discriminator_forward.1} parent=0 // pred_check
    _
  $region27: #{discriminator_forward.1} parent=0 // pred_check_branch
    %25 = sbr.rel (0) target = $region29
  $region28: #{discriminator_forward.1} parent=0 // pred_region
    _
  $region29: #{discriminator_forward.1} parent=0 // pred_fallthru
    _
  %v27 = vld [vmem:[%s0] sm:$0xf]
  %v28 = vld [vmem:[%s1] sm:$0xf]
  %v29 = vld [vmem:[%s1 + $0x4] sm:$0xf]
  %v30 = vld [vmem:[%s1 + $0x8] sm:$0xf]
  %v31 = vld [vmem:[%s1 + $0xc] sm:$0xf]
  %v32 = vld [vmem:[%s1 + $0x10] sm:$0xf]
  %v33 = vld [vmem:[%s1 + $0x14] sm:$0xf]
  %v34 = vld [vmem:[%s1 + $0x18] sm:$0xf]
  %v35 = vld [vmem:[%s1 + $0x1c] sm:$0xf]
  %v36 = vld [vmem:[%s2] sm:$0x1]
  %v38 = vlaneseq
  %v39 = vshrl.u32 %v38, 7
  %v40 = vsub.s32 0, %v39
  %v41 = vrot.slane %v36, %v40
  %v51 = vunpack.c.l.b16 %v28
  %v52 = vunpack.c.l.b16 %v29
  %v53 = vunpack.c.l.b16 %v30
  %v54 = vunpack.c.l.b16 %v31
  %v55 = vunpack.c.l.b16 %v32
  %v56 = vunpack.c.l.b16 %v33
  %v57 = vunpack.c.l.b16 %v34
  %v58 = vunpack.c.l.b16 %v35
  %v59 = vpack.c.b16 %v52, %v51
  %v60 = vpack.c.b16 %v54, %v53
  %v61 = vpack.c.b16 %v56, %v55
  %v62 = vpack.c.b16 %v58, %v57
  %vm67 = vcmask 523264
  %v69 = vsel %vm67, %v27, 0
  %71 = vmatprep.subr.bf16.mxu0 0
  %72 = vmatpush1.bf16.msra.mxu0 0
  %73 = vmatprep.subr.bf16.mxu0 0
  %74 = vmatpush1.bf16.msra.mxu0 0
  %75 = vmatprep.subr.bf16.mxu0 0
  %76 = vmatpush1.bf16.msra.mxu0 0
  %77 = vmatprep.subr.bf16.mxu0 0
  %78 = vmatpush1.bf16.msra.mxu0 0
  %79 = vmatprep.subr.bf16.mxu0 0
  %80 = vmatpush1.bf16.msra.mxu0 %v62
  %81 = vmatprep.subr.bf16.mxu0 0
  %82 = vmatpush1.bf16.msra.mxu0 %v61
  %83 = vmatprep.subr.bf16.mxu0 0
  %84 = vmatpush1.bf16.msra.mxu0 %v60
  %85 = vmatprep.subr.bf16.mxu0 0
  %86 = vmatpush1.bf16.msra.mxu0 %v59
  %87 = vmatprep.subr.bf16.mxu0 0
  %88 = vmatpush2.bf16.msra.mxu0 0
  %89 = vmatprep.subr.bf16.mxu0 0
  %90 = vmatpush2.bf16.msra.mxu0 0
  %91 = vmatprep.subr.bf16.mxu0 0
  %92 = vmatpush2.bf16.msra.mxu0 0
  %93 = vmatprep.subr.bf16.mxu0 0
  %94 = vmatpush2.bf16.msra.mxu0 0
  %95 = vmatprep.subr.bf16.mxu0 0
  %96 = vmatpush2.bf16.msra.mxu0 0
  %97 = vmatprep.subr.bf16.mxu0 0
  %98 = vmatpush2.bf16.msra.mxu0 0
  %99 = vmatprep.subr.bf16.mxu0 0
  %100 = vmatpush2.bf16.msra.mxu0 0
  %101 = vmatprep.subr.bf16.mxu0 0
  %102 = vmatpush2.bf16.msra.mxu0 0
  %103 = vmatprep.mubr.bf16.mxu0 0
  %104 = vmatmul.mubr.bf16.gmra.mxu0 %v69
  %v105 = vpop.f32.mrf.mxu0
  %v106 = vadd.f32 %v41, %v105
  %v107 = vpop.f32.mrf.mxu0
  %v108 = vpop.f32.mrf.mxu0
  %v109 = vpop.f32.mrf.mxu0
  %110 = vdwg.mxu0
  %v111 = vmax.f32 %v106, 0.0
  %v112 = vpack.c.bf16 %v111, %v111
  %v113 = vld [vmem:[%s3] sm:$0xf]
  %v114 = vld [vmem:[%s3 + $0x4] sm:$0xf]
  %v115 = vld [vmem:[%s3 + $0x8] sm:$0xf]
  %v116 = vld [vmem:[%s3 + $0xc] sm:$0xf]
  %v117 = vld [vmem:[%s3 + $0x10] sm:$0xf]
  %v118 = vld [vmem:[%s3 + $0x14] sm:$0xf]
  %v119 = vld [vmem:[%s3 + $0x18] sm:$0xf]
  %v120 = vld [vmem:[%s3 + $0x1c] sm:$0xf]
  %v121 = vld [vmem:[%s3 + $0x20] sm:$0xf]
  %v122 = vld [vmem:[%s3 + $0x24] sm:$0xf]
  %v123 = vld [vmem:[%s3 + $0x28] sm:$0xf]
  %v124 = vld [vmem:[%s3 + $0x2c] sm:$0xf]
  %v125 = vld [vmem:[%s3 + $0x30] sm:$0xf]
  %v126 = vld [vmem:[%s3 + $0x34] sm:$0xf]
  %v127 = vld [vmem:[%s3 + $0x38] sm:$0xf]
  %v128 = vld [vmem:[%s3 + $0x3c] sm:$0xf]
  %v129 = vld [vmem:[%s4] sm:$0x1]
  %v131 = vlaneseq
  %v132 = vshrl.u32 %v131, 7
  %v133 = vsub.s32 0, %v132
  %v134 = vrot.slane %v129, %v133
  %v152 = vunpack.c.l.b16 %v113
  %v153 = vunpack.c.l.b16 %v114
  %v154 = vunpack.c.l.b16 %v115
  %v155 = vunpack.c.l.b16 %v116
  %v156 = vunpack.c.l.b16 %v117
  %v157 = vunpack.c.l.b16 %v118
  %v158 = vunpack.c.l.b16 %v119
  %v159 = vunpack.c.l.b16 %v120
  %v160 = vunpack.c.l.b16 %v121
  %v161 = vunpack.c.l.b16 %v122
  %v162 = vunpack.c.l.b16 %v123
  %v163 = vunpack.c.l.b16 %v124
  %v164 = vunpack.c.l.b16 %v125
  %v165 = vunpack.c.l.b16 %v126
  %v166 = vunpack.c.l.b16 %v127
  %v167 = vunpack.c.l.b16 %v128
  %v168 = vpack.c.b16 %v153, %v152
  %v169 = vpack.c.b16 %v155, %v154
  %v170 = vpack.c.b16 %v157, %v156
  %v171 = vpack.c.b16 %v159, %v158
  %v172 = vpack.c.b16 %v161, %v160
  %v173 = vpack.c.b16 %v163, %v162
  %v174 = vpack.c.b16 %v165, %v164
  %v175 = vpack.c.b16 %v167, %v166
  %184 = vmatprep.subr.bf16.mxu0 0
  %185 = vmatpush1.bf16.msra.mxu0 %v175
  %186 = vmatprep.subr.bf16.mxu0 0
  %187 = vmatpush1.bf16.msra.mxu0 %v174
  %188 = vmatprep.subr.bf16.mxu0 0
  %189 = vmatpush1.bf16.msra.mxu0 %v173
  %190 = vmatprep.subr.bf16.mxu0 0
  %191 = vmatpush1.bf16.msra.mxu0 %v172
  %192 = vmatprep.subr.bf16.mxu0 0
  %193 = vmatpush1.bf16.msra.mxu0 %v171
  %194 = vmatprep.subr.bf16.mxu0 0
  %195 = vmatpush1.bf16.msra.mxu0 %v170
  %196 = vmatprep.subr.bf16.mxu0 0
  %197 = vmatpush1.bf16.msra.mxu0 %v169
  %198 = vmatprep.subr.bf16.mxu0 0
  %199 = vmatpush1.bf16.msra.mxu0 %v168
  %200 = vmatprep.subr.bf16.mxu0 0
  %201 = vmatpush2.bf16.msra.mxu0 0
  %202 = vmatprep.subr.bf16.mxu0 0
  %203 = vmatpush2.bf16.msra.mxu0 0
  %204 = vmatprep.subr.bf16.mxu0 0
  %205 = vmatpush2.bf16.msra.mxu0 0
  %206 = vmatprep.subr.bf16.mxu0 0
  %207 = vmatpush2.bf16.msra.mxu0 0
  %208 = vmatprep.subr.bf16.mxu0 0
  %209 = vmatpush2.bf16.msra.mxu0 0
  %210 = vmatprep.subr.bf16.mxu0 0
  %211 = vmatpush2.bf16.msra.mxu0 0
  %212 = vmatprep.subr.bf16.mxu0 0
  %213 = vmatpush2.bf16.msra.mxu0 0
  %214 = vmatprep.subr.bf16.mxu0 0
  %215 = vmatpush2.bf16.msra.mxu0 0
  %216 = vmatprep.mubr.bf16.mxu0 0
  %217 = vmatmul.mubr.bf16.gmra.mxu0 %v112
  %v218 = vpop.f32.mrf.mxu0
  %v219 = vadd.f32 %v134, %v218
  %v220 = vpop.f32.mrf.mxu0
  %v221 = vpop.f32.mrf.mxu0
  %v222 = vpop.f32.mrf.mxu0
  %223 = vdwg.mxu0
  %v224 = vmax.f32 %v219, 0.0
  %v225 = vpack.c.bf16 %v224, %v224
  %v226 = vld [vmem:[%s5] sm:$0xf]
  %v227 = vld [vmem:[%s5 + $0x4] sm:$0xf]
  %v228 = vld [vmem:[%s5 + $0x8] sm:$0xf]
  %v229 = vld [vmem:[%s5 + $0xc] sm:$0xf]
  %v230 = vld [vmem:[%s5 + $0x10] sm:$0xf]
  %v231 = vld [vmem:[%s5 + $0x14] sm:$0xf]
  %v232 = vld [vmem:[%s5 + $0x18] sm:$0xf]
  %v233 = vld [vmem:[%s5 + $0x1c] sm:$0xf]
  %v234 = vld [vmem:[%s5 + $0x20] sm:$0xf]
  %v235 = vld [vmem:[%s5 + $0x24] sm:$0xf]
  %v236 = vld [vmem:[%s5 + $0x28] sm:$0xf]
  %v237 = vld [vmem:[%s5 + $0x2c] sm:$0xf]
  %v238 = vld [vmem:[%s5 + $0x30] sm:$0xf]
  %v239 = vld [vmem:[%s5 + $0x34] sm:$0xf]
  %v240 = vld [vmem:[%s5 + $0x38] sm:$0xf]
  %v241 = vld [vmem:[%s5 + $0x3c] sm:$0xf]
  %v242 = vld [vmem:[%s6] sm:$0x1]
  %v244 = vlaneseq
  %v245 = vshrl.u32 %v244, 7
  %v246 = vsub.s32 0, %v245
  %v247 = vrot.slane %v242, %v246
  %v265 = vunpack.c.l.b16 %v226
  %v266 = vunpack.c.l.b16 %v227
  %v267 = vunpack.c.l.b16 %v228
  %v268 = vunpack.c.l.b16 %v229
  %v269 = vunpack.c.l.b16 %v230
  %v270 = vunpack.c.l.b16 %v231
  %v271 = vunpack.c.l.b16 %v232
  %v272 = vunpack.c.l.b16 %v233
  %v273 = vunpack.c.l.b16 %v234
  %v274 = vunpack.c.l.b16 %v235
  %v275 = vunpack.c.l.b16 %v236
  %v276 = vunpack.c.l.b16 %v237
  %v277 = vunpack.c.l.b16 %v238
  %v278 = vunpack.c.l.b16 %v239
  %v279 = vunpack.c.l.b16 %v240
  %v280 = vunpack.c.l.b16 %v241
  %v281 = vpack.c.b16 %v266, %v265
  %v282 = vpack.c.b16 %v268, %v267
  %v283 = vpack.c.b16 %v270, %v269
  %v284 = vpack.c.b16 %v272, %v271
  %v285 = vpack.c.b16 %v274, %v273
  %v286 = vpack.c.b16 %v276, %v275
  %v287 = vpack.c.b16 %v278, %v277
  %v288 = vpack.c.b16 %v280, %v279
  %297 = vmatprep.subr.bf16.mxu0 0
  %298 = vmatpush1.bf16.msra.mxu0 %v288
  %299 = vmatprep.subr.bf16.mxu0 0
  %300 = vmatpush1.bf16.msra.mxu0 %v287
  %301 = vmatprep.subr.bf16.mxu0 0
  %302 = vmatpush1.bf16.msra.mxu0 %v286
  %303 = vmatprep.subr.bf16.mxu0 0
  %304 = vmatpush1.bf16.msra.mxu0 %v285
  %305 = vmatprep.subr.bf16.mxu0 0
  %306 = vmatpush1.bf16.msra.mxu0 %v284
  %307 = vmatprep.subr.bf16.mxu0 0
  %308 = vmatpush1.bf16.msra.mxu0 %v283
  %309 = vmatprep.subr.bf16.mxu0 0
  %310 = vmatpush1.bf16.msra.mxu0 %v282
  %311 = vmatprep.subr.bf16.mxu0 0
  %312 = vmatpush1.bf16.msra.mxu0 %v281
  %313 = vmatprep.subr.bf16.mxu0 0
  %314 = vmatpush2.bf16.msra.mxu0 0
  %315 = vmatprep.subr.bf16.mxu0 0
  %316 = vmatpush2.bf16.msra.mxu0 0
  %317 = vmatprep.subr.bf16.mxu0 0
  %318 = vmatpush2.bf16.msra.mxu0 0
  %319 = vmatprep.subr.bf16.mxu0 0
  %320 = vmatpush2.bf16.msra.mxu0 0
  %321 = vmatprep.subr.bf16.mxu0 0
  %322 = vmatpush2.bf16.msra.mxu0 0
  %323 = vmatprep.subr.bf16.mxu0 0
  %324 = vmatpush2.bf16.msra.mxu0 0
  %325 = vmatprep.subr.bf16.mxu0 0
  %326 = vmatpush2.bf16.msra.mxu0 0
  %327 = vmatprep.subr.bf16.mxu0 0
  %328 = vmatpush2.bf16.msra.mxu0 0
  %329 = vmatprep.mubr.bf16.mxu0 0
  %330 = vmatmul.mubr.bf16.gmra.mxu0 %v225
  %v331 = vpop.f32.mrf.mxu0
  %v332 = vadd.f32 %v247, %v331
  %v333 = vpop.f32.mrf.mxu0
  %v334 = vpop.f32.mrf.mxu0
  %v335 = vpop.f32.mrf.mxu0
  %336 = vdwg.mxu0
  %337 = vst [vmem:[%s7] sm:$0xff] %v332
  // Predicated region
  $region30: #{discriminator_forward.1} parent=0 // pred_check
    _
  $region31: #{discriminator_forward.1} parent=0 // pred_check_branch
    %339 = sbr.rel (0) target = $region33
  $region32: #{discriminator_forward.1} parent=0 // pred_region
    _
  $region33: #{discriminator_forward.1} parent=0 // pred_fallthru
    _
  // Predicated region
  $region34: #{discriminator_forward.1} parent=0 // pred_check
    _
  $region35: #{discriminator_forward.1} parent=0 // pred_check_branch
    %341 = sbr.rel (0) target = $region37
  $region36: #{discriminator_forward.1} parent=0 // pred_region
    _
  $region37: #{discriminator_forward.1} parent=0 // pred_fallthru
    _

</llo_original>
